<compile_context>
chip_gen: v7x
topology: tpu7x:2x2x1
jax: 0.10.0
libtpu: 0.0.40
codegen_flags: <defaults>
</compile_context>

<pallas_src>
import functools

import jax
import jax.numpy as jnp
from jax import lax
from jax.experimental import pallas as pl
from jax.experimental.pallas import tpu as pltpu

# ----------------------------- config -------------------------------------
N_VOCAB = 50
EMBED = 32
SEQ_LEN = 16
NUM_FILTERS = 8
FILTER_SIZES = (2, 3, 4)
NUM_CLASSES = 5
BATCH = 2


# --------------------------- fused kernel ---------------------------------
def _fused_textcnn_kernel(ids_ref, tab_ref, w_ref, cb_ref, mask_ref,
                          fcw_ref, fcb_ref, out_ref, *, seq_len, k_max, embed):
    # ids_ref : (B*S, 1) int32        token ids, batch-major rows
    # tab_ref : (V_pad, E) f32        embedding table (vocab padded to mult of 8)
    # w_ref   : (k_max*E, F_total)    all conv banks; taps >= k are EXACTLY zero
    # cb_ref  : (1, F_total)          concatenated conv biases
    # mask_ref: (B*S, F_total)        1.0 where window t < S-k+1 for that bank
    # fcw_ref : (F_total, C)          classifier weight (pre-transposed)
    # fcb_ref : (1, C)                classifier bias
    # out_ref : (B, C)                logits
    bs = ids_ref.shape[0]
    v_pad = tab_ref.shape[0]
    f_total = w_ref.shape[-1]
    s = seq_len
    b = bs // s

    # ---- embedding as an exact one-hot matmul (gather stays on-chip) ----
    # NOTE: ids outside [0, V_pad) yield an all-zero one-hot row (silent zero
    # embedding) where nn.Embedding would raise; benign for valid inputs.
    ids = ids_ref[...]                                              # (B*S, 1)
    vocab_iota = lax.broadcasted_iota(jnp.int32, (bs, v_pad), 1)
    onehot = (vocab_iota == ids).astype(jnp.float32)                # (B*S, V)
    emb = jnp.dot(onehot, tab_ref[...],
                  preferred_element_type=jnp.float32)               # (B*S, E)

    # ---- all conv banks via per-tap accumulation over XLU rolls ----
    # Tap o multiplies row t by w[o]; rows that wrap across a sequence /
    # batch boundary only contribute to windows t >= S-k+1, which mask_ref
    # zeroes after ReLU (exact because padded taps >= k are zero and
    # k_max <= S).
    conv = jnp.dot(emb, w_ref[0:embed, :],
                   preferred_element_type=jnp.float32)              # (B*S, F_total)
    for o in range(1, k_max):
        shifted = pltpu.roll(emb, shift=bs - o, axis=0)             # row t -> emb[t+o]
        conv = conv + jnp.dot(shifted, w_ref[o * embed:(o + 1) * embed, :],
                              preferred_element_type=jnp.float32)

    conv = jnp.maximum(conv + cb_ref[...], 0.0)                     # bias + ReLU
    conv = conv * mask_ref[...]                                     # ReLU >= 0 -> exact

    # ---- global max-pool over time: one sublane reduce per batch ----
    pooled = jnp.max(conv.reshape(b, s, f_total), axis=1)           # (B, F_total)

    # ---- dropout is identity in eval mode; final classifier ----
    # TODO(synk): training-mode dropout would need pltpu.prng_seed/prng_random_bits here.
    out_ref[...] = (jnp.dot(pooled, fcw_ref[...],
                            preferred_element_type=jnp.float32) + fcb_ref[...])


# ------------------------------ wrapper ------------------------------------
def textcnn_forward(kparams, ids):
    b, s = ids.shape
    ids_col = ids.reshape(b * s, 1).astype(jnp.int32)
    table = kparams["table"]
    w_flat = kparams["w_flat"]
    f_total = w_flat.shape[-1]
    c = kparams["fc_w"].shape[-1]
    k_max = max(FILTER_SIZES)
    v_pad, e = table.shape

    flops = (2 * b * s * v_pad * e                  # one-hot embedding matmul
             + 2 * b * s * e * f_total * k_max      # per-tap conv matmuls
             + 2 * b * f_total * c)                 # classifier
    bytes_accessed = (int(ids_col.size) * 4 + b * c * 4
                      + sum(int(a.size) * 4 for a in
                            (table, w_flat, kparams["conv_b"], kparams["mask"],
                             kparams["fc_w"], kparams["fc_b"])))

    kern = functools.partial(_fused_textcnn_kernel, seq_len=s,
                             k_max=k_max, embed=e)
    # Gridless call: every operand is a single whole-array VMEM block.
    return pl.pallas_call(
        kern,
        out_shape=jax.ShapeDtypeStruct((b, c), jnp.float32),
        cost_estimate=pl.CostEstimate(flops=flops, transcendentals=0,
                                      bytes_accessed=bytes_accessed),
    )(ids_col, table, w_flat, kparams["conv_b"], kparams["mask"],
      kparams["fc_w"], kparams["fc_b"])


# --------------------------- params & layout -------------------------------
def init_params(key):
    keys = jax.random.split(key, 2 + 2 * len(FILTER_SIZES) + 2)
    it = iter(keys)
    emb_table = 0.1 * jax.random.normal(next(it), (N_VOCAB, EMBED), jnp.float32)
    # padding_idx = N_VOCAB - 1 -> zero row (matches nn.Embedding padding_idx init)
    emb_table = emb_table.at[N_VOCAB - 1].set(0.0)
    convs = []
    for k in FILTER_SIZES:
        w = 0.1 * jax.random.normal(next(it), (NUM_FILTERS, k, EMBED), jnp.float32)
        b = 0.1 * jax.random.normal(next(it), (NUM_FILTERS,), jnp.float32)
        convs.append((w, b))
    d = NUM_FILTERS * len(FILTER_SIZES)
    fc_w = 0.1 * jax.random.normal(next(it), (NUM_CLASSES, d), jnp.float32)
    fc_b = 0.1 * jax.random.normal(next(it), (NUM_CLASSES,), jnp.float32)
    return {"embedding": emb_table, "convs": convs, "fc_w": fc_w, "fc_b": fc_b}


def prepare_kernel_params(params):
    """One-time layout prep: all transposes / pads / flattens / masks here."""
    k_max = max(FILTER_SIZES)
    # The in-kernel roll trick is only exact if padded taps are zero AND
    # max(FILTER_SIZES) <= SEQ_LEN.  Guard both invariants here.
    assert k_max <= SEQ_LEN, "roll-based conv requires max filter size <= SEQ_LEN"

    v_pad = ((N_VOCAB + 7) // 8) * 8
    table = jnp.pad(params["embedding"], ((0, v_pad - N_VOCAB), (0, 0)))

    slabs, biases = [], []
    for k, (w, bias) in zip(FILTER_SIZES, params["convs"]):
        w_kef = jnp.transpose(w, (1, 2, 0))                         # (F,k,E) -> (k,E,F)
        # Taps >= k MUST be exactly zero: they absorb the rolled-in rows.
        w_kef = jnp.pad(w_kef, ((0, k_max - k), (0, 0), (0, 0)))
        slabs.append(w_kef)
        biases.append(bias)
    w_slab = jnp.concatenate(slabs, axis=-1)                        # (k_max, E, F_total)
    f_total = w_slab.shape[-1]

    # Compile-time window-validity mask: window t of a bank with filter size k
    # is valid iff t < SEQ_LEN - k + 1.  Shape (B*S, F_total), batch-tiled.
    t_idx = jnp.arange(SEQ_LEN, dtype=jnp.int32)[:, None]           # (S, 1)
    limit = jnp.concatenate(
        [jnp.full((NUM_FILTERS,), SEQ_LEN - k + 1, jnp.int32) for k in FILTER_SIZES]
    )[None, :]                                                      # (1, F_total)
    mask = (t_idx < limit).astype(jnp.float32)                      # (S, F_total)
    mask = jnp.tile(mask, (BATCH, 1))                               # (B*S, F_total)

    return {
        "table": table,                                             # (V_pad, E)
        "w_flat": w_slab.reshape(k_max * EMBED, f_total),           # row = o*E + e
        "conv_b": jnp.concatenate(biases).reshape(1, f_total),
        "mask": mask,                                               # (B*S, F_total)
        "fc_w": params["fc_w"].T,                                   # (F_total, C)
        "fc_b": params["fc_b"].reshape(1, NUM_CLASSES),
    }


# ----------------------- pure-JAX reference check --------------------------
def textcnn_reference(params, ids):
    emb = jnp.take(params["embedding"], ids, axis=0)
    feats = []
    for k, (w, b) in zip(FILTER_SIZES, params["convs"]):
        L = SEQ_LEN - k + 1
        acc = jnp.zeros((BATCH, L, NUM_FILTERS), jnp.float32)
        for o in range(k):
            acc = acc + jnp.einsum("ble,fe->blf", emb[:, o:o + L, :], w[:, o, :])
        acc = jnp.maximum(acc + b[None, None, :], 0.0)
        feats.append(jnp.max(acc, axis=1))
    out = jnp.concatenate(feats, axis=1)
    return out @ params["fc_w"].T + params["fc_b"]


if __name__ == "__main__":
    key = jax.random.PRNGKey(0)
    pkey, ikey = jax.random.split(key)
    params = init_params(pkey)
    kparams = prepare_kernel_params(params)                 # one-time layout prep
    ids = jax.random.randint(ikey, (BATCH, SEQ_LEN), 0, N_VOCAB, dtype=jnp.int32)

    fwd = jax.jit(textcnn_forward)
    out = jax.block_until_ready(fwd(kparams, ids))

    ref = textcnn_reference(params, ids)
    assert out.shape == (BATCH, NUM_CLASSES)
    assert jnp.allclose(out, ref, atol=1e-5, rtol=1e-5), (out, ref)
    print("KERNEL_OK")
</pallas_src>

<mosaic_0001>
module attributes {stable_mosaic.version = 11 : i64} {
  func.func @_fused_textcnn_kernel(%arg0: memref<32x1xi32, #tpu.memory_space<vmem>>, %arg1: memref<56x32xf32, #tpu.memory_space<vmem>>, %arg2: memref<128x24xf32, #tpu.memory_space<vmem>>, %arg3: memref<1x24xf32, #tpu.memory_space<vmem>>, %arg4: memref<32x24xf32, #tpu.memory_space<vmem>>, %arg5: memref<24x5xf32, #tpu.memory_space<vmem>>, %arg6: memref<1x5xf32, #tpu.memory_space<vmem>>, %arg7: memref<2x5xf32, #tpu.memory_space<vmem>>) attributes {dimension_semantics = [], scalar_prefetch = 0 : i64, scratch_operands = 0 : i64, tpu.core_type = #tpu.core_type<tc>} {
    %c0 = arith.constant 0 : index
    %c0_0 = arith.constant 0 : index
    %0 = vector.load %arg0[%c0, %c0_0] : memref<32x1xi32, #tpu.memory_space<vmem>>, vector<32x1xi32>
    %1 = tpu.iota {dimensions = array<i32: 1>} : vector<32x56xi32>
    %2 = vector.broadcast %0 : vector<32x1xi32> to vector<32x56xi32>
    %3 = arith.cmpi eq, %1, %2 : vector<32x56xi32>
    %4 = arith.extui %3 : vector<32x56xi1> to vector<32x56xi32>
    %5 = arith.sitofp %4 : vector<32x56xi32> to vector<32x56xf32>
    %c0_1 = arith.constant 0 : index
    %c0_2 = arith.constant 0 : index
    %6 = vector.load %arg1[%c0_1, %c0_2] : memref<56x32xf32, #tpu.memory_space<vmem>>, vector<56x32xf32>
    %cst = arith.constant dense<0.000000e+00> : vector<32x32xf32>
    %7 = tpu.matmul %5, %6, %cst {dimension_numbers = #tpu.dot_dimension_numbers<[1], [0], [0], [1], [0, 0, 1, 1], [], []>} : vector<32x56xf32>, vector<56x32xf32>, vector<32x32xf32> -> vector<32x32xf32>
    %c0_3 = arith.constant 0 : index
    %c0_4 = arith.constant 0 : index
    %8 = vector.load %arg2[%c0_3, %c0_4] : memref<128x24xf32, #tpu.memory_space<vmem>>, vector<32x24xf32>
    %cst_5 = arith.constant dense<0.000000e+00> : vector<32x24xf32>
    %9 = tpu.matmul %7, %8, %cst_5 {dimension_numbers = #tpu.dot_dimension_numbers<[1], [0], [0], [1], [0, 0, 1, 1], [], []>} : vector<32x32xf32>, vector<32x24xf32>, vector<32x24xf32> -> vector<32x24xf32>
    %c31_i32 = arith.constant 31 : i32
    %10 = tpu.dynamic_rotate %7 by %c31_i32 dim 0 : vector<32x32xf32>, i32 -> vector<32x32xf32>
    %c32 = arith.constant 32 : index
    %c0_6 = arith.constant 0 : index
    %11 = vector.load %arg2[%c32, %c0_6] : memref<128x24xf32, #tpu.memory_space<vmem>>, vector<32x24xf32>
    %cst_7 = arith.constant dense<0.000000e+00> : vector<32x24xf32>
    %12 = tpu.matmul %10, %11, %cst_7 {dimension_numbers = #tpu.dot_dimension_numbers<[1], [0], [0], [1], [0, 0, 1, 1], [], []>} : vector<32x32xf32>, vector<32x24xf32>, vector<32x24xf32> -> vector<32x24xf32>
    %13 = arith.addf %9, %12 : vector<32x24xf32>
    %c30_i32 = arith.constant 30 : i32
    %14 = tpu.dynamic_rotate %7 by %c30_i32 dim 0 : vector<32x32xf32>, i32 -> vector<32x32xf32>
    %c64 = arith.constant 64 : index
    %c0_8 = arith.constant 0 : index
    %15 = vector.load %arg2[%c64, %c0_8] : memref<128x24xf32, #tpu.memory_space<vmem>>, vector<32x24xf32>
    %cst_9 = arith.constant dense<0.000000e+00> : vector<32x24xf32>
    %16 = tpu.matmul %14, %15, %cst_9 {dimension_numbers = #tpu.dot_dimension_numbers<[1], [0], [0], [1], [0, 0, 1, 1], [], []>} : vector<32x32xf32>, vector<32x24xf32>, vector<32x24xf32> -> vector<32x24xf32>
    %17 = arith.addf %13, %16 : vector<32x24xf32>
    %c29_i32 = arith.constant 29 : i32
    %18 = tpu.dynamic_rotate %7 by %c29_i32 dim 0 : vector<32x32xf32>, i32 -> vector<32x32xf32>
    %c96 = arith.constant 96 : index
    %c0_10 = arith.constant 0 : index
    %19 = vector.load %arg2[%c96, %c0_10] : memref<128x24xf32, #tpu.memory_space<vmem>>, vector<32x24xf32>
    %cst_11 = arith.constant dense<0.000000e+00> : vector<32x24xf32>
    %20 = tpu.matmul %18, %19, %cst_11 {dimension_numbers = #tpu.dot_dimension_numbers<[1], [0], [0], [1], [0, 0, 1, 1], [], []>} : vector<32x32xf32>, vector<32x24xf32>, vector<32x24xf32> -> vector<32x24xf32>
    %21 = arith.addf %17, %20 : vector<32x24xf32>
    %c0_12 = arith.constant 0 : index
    %c0_13 = arith.constant 0 : index
    %22 = vector.load %arg3[%c0_12, %c0_13] : memref<1x24xf32, #tpu.memory_space<vmem>>, vector<1x24xf32>
    %23 = vector.broadcast %22 : vector<1x24xf32> to vector<32x24xf32>
    %24 = arith.addf %21, %23 : vector<32x24xf32>
    %cst_14 = arith.constant 0.000000e+00 : f32
    %25 = vector.broadcast %cst_14 : f32 to vector<32x24xf32>
    %26 = arith.maximumf %24, %25 : vector<32x24xf32>
    %c0_15 = arith.constant 0 : index
    %c0_16 = arith.constant 0 : index
    %27 = vector.load %arg4[%c0_15, %c0_16] : memref<32x24xf32, #tpu.memory_space<vmem>>, vector<32x24xf32>
    %28 = arith.mulf %26, %27 : vector<32x24xf32>
    %29 = vector.shape_cast %28 : vector<32x24xf32> to vector<2x16x24xf32>
    %cst_17 = arith.constant dense<0xFF800000> : vector<2x24xf32>
    %30 = vector.multi_reduction <maximumf>, %29, %cst_17 [1] : vector<2x16x24xf32> to vector<2x24xf32>
    %c0_18 = arith.constant 0 : index
    %c0_19 = arith.constant 0 : index
    %31 = vector.load %arg5[%c0_18, %c0_19] : memref<24x5xf32, #tpu.memory_space<vmem>>, vector<24x5xf32>
    %cst_20 = arith.constant dense<0.000000e+00> : vector<2x5xf32>
    %32 = tpu.matmul %30, %31, %cst_20 {dimension_numbers = #tpu.dot_dimension_numbers<[1], [0], [0], [1], [0, 0, 1, 1], [], []>} : vector<2x24xf32>, vector<24x5xf32>, vector<2x5xf32> -> vector<2x5xf32>
    %c0_21 = arith.constant 0 : index
    %c0_22 = arith.constant 0 : index
    %33 = vector.load %arg6[%c0_21, %c0_22] : memref<1x5xf32, #tpu.memory_space<vmem>>, vector<1x5xf32>
    %34 = vector.broadcast %33 : vector<1x5xf32> to vector<2x5xf32>
    %35 = arith.addf %32, %34 : vector<2x5xf32>
    %c0_23 = arith.constant 0 : index
    %c0_24 = arith.constant 0 : index
    %36 = vector.load %arg7[%c0_23, %c0_24] : memref<2x5xf32, #tpu.memory_space<vmem>>, vector<2x5xf32>
    tpu.vector_store %arg7[%c0_23, %c0_24], %35 {strides = array<i32>} : memref<2x5xf32, #tpu.memory_space<vmem>>, vector<2x5xf32>,
    return
  }
}

</mosaic_0001>

<llo_original>
// kernel: textcnn_forward.1
$region0: #{textcnn_forward.1}
  #allocation0 [shape = 'u32[]', space=smem, size = 0x4, offset = 0x4, fixed_abs, tag = 'smem constant byte address 0x4 - core index']
  #allocation1 [shape = 'u32[144,128]{1,0:T(1,128)}', space=vmem, size = 0x12000, scoped, tag = 'internal scratch']
  %s0 = inlined_call_operand.vmem [shape: s32[32,1], index: 0, kind: input, shape index: {}]
  %s1 = inlined_call_operand.vmem [shape: f32[56,32], index: 1, kind: input, shape index: {}]
  %s2 = inlined_call_operand.vmem [shape: f32[128,24], index: 2, kind: input, shape index: {}]
  %s3 = inlined_call_operand.vmem [shape: f32[1,24], index: 3, kind: input, shape index: {}]
  %s4 = inlined_call_operand.vmem [shape: f32[32,24], index: 4, kind: input, shape index: {}]
  %s5 = inlined_call_operand.vmem [shape: f32[24,5], index: 5, kind: input, shape index: {}]
  %s6 = inlined_call_operand.vmem [shape: f32[1,5], index: 6, kind: input, shape index: {}]
  %s7 = inlined_call_operand.hbm [shape: f32[2,5], index: 7, kind: output, shape index: {}]
  %s8 = sld [smem:[#allocation0]]
  $region38: #{textcnn_forward.1} parent=0
    _
  %s10 = ssub.s32 1, %s8
  %s11 = scalar_select 0, %s10, %s8
  $region1: #{textcnn_forward.1} parent=0
    #allocation2 [shape = 'u8[1024]{0}', space=vmem, size = 0x400, scoped, tag = 'output window, operand 0, single buffered']
    #allocation3 [shape = 's32[1]{0}', space=sflag, size = 0x4, scoped, tag = 'scoped memory for textcnn_forward.1']
    %12 = vsyncpa [#allocation3], 0
    // Predicated region
    $region2: #{textcnn_forward.1} parent=1 // pred_check
      _
    $region3: #{textcnn_forward.1} parent=1 // pred_check_branch
      %14 = sbr.rel (0) target = $region5
    $region4: #{textcnn_forward.1} parent=1 // pred_region
      _
    $region5: #{textcnn_forward.1} parent=1 // pred_fallthru
      _
    // Predicated region
    $region6: #{textcnn_forward.1} parent=1 // pred_check
      _
    $region7: #{textcnn_forward.1} parent=1 // pred_check_branch
      %16 = sbr.rel (0) target = $region9
    $region8: #{textcnn_forward.1} parent=1 // pred_region
      _
    $region9: #{textcnn_forward.1} parent=1 // pred_fallthru
      _
    // Predicated region
    $region10: #{textcnn_forward.1} parent=1 // pred_check
      _
    $region11: #{textcnn_forward.1} parent=1 // pred_check_branch
      %18 = sbr.rel (0) target = $region13
    $region12: #{textcnn_forward.1} parent=1 // pred_region
      _
    $region13: #{textcnn_forward.1} parent=1 // pred_fallthru
      _
    // Predicated region
    $region14: #{textcnn_forward.1} parent=1 // pred_check
      _
    $region15: #{textcnn_forward.1} parent=1 // pred_check_branch
      %20 = sbr.rel (0) target = $region17
    $region16: #{textcnn_forward.1} parent=1 // pred_region
      _
    $region17: #{textcnn_forward.1} parent=1 // pred_fallthru
      _
    // Predicated region
    $region18: #{textcnn_forward.1} parent=1 // pred_check
      _
    $region19: #{textcnn_forward.1} parent=1 // pred_check_branch
      %22 = sbr.rel (0) target = $region21
    $region20: #{textcnn_forward.1} parent=1 // pred_region
      _
    $region21: #{textcnn_forward.1} parent=1 // pred_fallthru
      _
    // Predicated region
    $region22: #{textcnn_forward.1} parent=1 // pred_check
      _
    $region23: #{textcnn_forward.1} parent=1 // pred_check_branch
      %24 = sbr.rel (0) target = $region25
    $region24: #{textcnn_forward.1} parent=1 // pred_region
      _
    $region25: #{textcnn_forward.1} parent=1 // pred_fallthru
      _
    // Predicated region
    $region26: #{textcnn_forward.1} parent=1 // pred_check
      _
    $region27: #{textcnn_forward.1} parent=1 // pred_check_branch
      %26 = sbr.rel (0) target = $region29
    $region28: #{textcnn_forward.1} parent=1 // pred_region
      _
    $region29: #{textcnn_forward.1} parent=1 // pred_fallthru
      _
    %v27 = vld [vmem:[%s0] sm:$0xff]
    %v28 = vld [vmem:[%s0 + $0x8] sm:$0xff]
    %v29 = vld [vmem:[%s0 + $0x10] sm:$0xff]
    %v30 = vld [vmem:[%s0 + $0x18] sm:$0xff]
    %v31 = vlaneseq
    %v32 = vand.u32 %v31, 127
    %33 = vset.pattern.permute.xlu0 0
    %34 = vperm.xlu0 %33, %v27
    %v35 = vpop.permute.xlu0 %34
    %36 = vset.pattern.permute.xlu0 0
    %37 = vperm.xlu0 %36, %v28
    %v38 = vpop.permute.xlu0 %37
    %39 = vset.pattern.permute.xlu0 0
    %40 = vperm.xlu0 %39, %v29
    %v41 = vpop.permute.xlu0 %40
    %42 = vset.pattern.permute.xlu0 0
    %43 = vperm.xlu0 %42, %v30
    %v44 = vpop.permute.xlu0 %43
    %vm45 = vcmp.eq.s32.totalorder %v32, %v35
    %vm46 = vcmp.eq.s32.totalorder %v32, %v38
    %vm47 = vcmp.eq.s32.totalorder %v32, %v41
    %vm48 = vcmp.eq.s32.totalorder %v32, %v44
    %v49 = vsel %vm45, 1, 0
    %v50 = vsel %vm46, 1, 0
    %v51 = vsel %vm47, 1, 0
    %v52 = vsel %vm48, 1, 0
    %v53 = vcvt.s32.f32 %v49
    %v54 = vcvt.s32.f32 %v50
    %v55 = vcvt.s32.f32 %v51
    %v56 = vcvt.s32.f32 %v52
    %v57 = vld [vmem:[%s1] sm:$0xff]
    %v58 = vld [vmem:[%s1 + $0x8] sm:$0xff]
    %v59 = vld [vmem:[%s1 + $0x10] sm:$0xff]
    %v60 = vld [vmem:[%s1 + $0x18] sm:$0xff]
    %v61 = vld [vmem:[%s1 + $0x20] sm:$0xff]
    %v62 = vld [vmem:[%s1 + $0x28] sm:$0xff]
    %v63 = vld [vmem:[%s1 + $0x30] sm:$0xff]
    %vm64 = vcmask 457728
    %v66 = vsel %vm64, %v53, 0
    %v69 = vsel %vm64, %v54, 0
    %v72 = vsel %vm64, %v55, 0
    %v75 = vsel %vm64, %v56, 0
    %77 = vmatprep.subr.mxu0 0.0
    %78 = vmatpush1.msra.mxu0 %v57
    %79 = vmatprep.subr.mxu0 0.0
    %80 = vmatpush1.msra.mxu0 %v58
    %81 = vmatprep.subr.mxu0 0.0
    %82 = vmatpush1.msra.mxu0 %v59
    %83 = vmatprep.subr.mxu0 0.0
    %84 = vmatpush1.msra.mxu0 %v60
    %85 = vmatprep.subr.mxu0 0.0
    %86 = vmatpush1.msra.mxu0 %v61
    %87 = vmatprep.subr.mxu0 0.0
    %88 = vmatpush1.msra.mxu0 %v62
    %89 = vmatprep.subr.mxu0 0.0
    %90 = vmatpush1.msra.mxu0 %v63
    %91 = vmatprep.subr.mxu0 0.0
    %92 = vmatpush1.msra.mxu0 0.0
    %93 = vmatprep.subr.mxu0 0.0
    %94 = vmatpush1.msra.mxu0 0.0
    %95 = vmatprep.subr.mxu0 0.0
    %96 = vmatpush1.msra.mxu0 0.0
    %97 = vmatprep.subr.mxu0 0.0
    %98 = vmatpush1.msra.mxu0 0.0
    %99 = vmatprep.subr.mxu0 0.0
    %100 = vmatpush1.msra.mxu0 0.0
    %101 = vmatprep.subr.mxu0 0.0
    %102 = vmatpush1.msra.mxu0 0.0
    %103 = vmatprep.subr.mxu0 0.0
    %104 = vmatpush1.msra.mxu0 0.0
    %105 = vmatprep.subr.mxu0 0.0
    %106 = vmatpush1.msra.mxu0 0.0
    %107 = vmatprep.subr.mxu0 0.0
    %108 = vmatpush1.msra.mxu0 0.0
    %109 = vmatprep.subr.mxu0 0.0
    %110 = vmatpush1.msra.mxu0 0.0
    %111 = vmatprep.subr.mxu0 0.0
    %112 = vmatpush1.msra.mxu0 0.0
    %113 = vmatprep.subr.mxu0 0.0
    %114 = vmatpush1.msra.mxu0 0.0
    %115 = vmatprep.subr.mxu0 0.0
    %116 = vmatpush1.msra.mxu0 0.0
    %117 = vmatprep.subr.mxu0 0.0
    %118 = vmatpush1.msra.mxu0 0.0
    %119 = vmatprep.subr.mxu0 0.0
    %120 = vmatpush1.msra.mxu0 0.0
    %121 = vmatprep.subr.mxu0 0.0
    %122 = vmatpush1.msra.mxu0 0.0
    %123 = vmatprep.subr.mxu0 0.0
    %124 = vmatpush1.msra.mxu0 0.0
    %125 = vmatprep.subr.mxu0 0.0
    %126 = vmatpush1.msra.mxu0 0.0
    %127 = vmatprep.subr.mxu0 0.0
    %128 = vmatpush1.msra.mxu0 0.0
    %129 = vmatprep.subr.mxu0 0.0
    %130 = vmatpush1.msra.mxu0 0.0
    %131 = vmatprep.subr.mxu0 0.0
    %132 = vmatpush1.msra.mxu0 0.0
    %133 = vmatprep.subr.mxu0 0.0
    %134 = vmatpush1.msra.mxu0 0.0
    %135 = vmatprep.subr.mxu0 0.0
    %136 = vmatpush1.msra.mxu0 0.0
    %137 = vmatprep.subr.mxu0 0.0
    %138 = vmatpush1.msra.mxu0 0.0
    %139 = vmatprep.subr.mxu0 0.0
    %140 = vmatpush1.msra.mxu0 0.0
    %141 = vmatprep.mubr.f32.mxu0 0.0
    %142 = vmatmul.mubr.f32.gmra.mrb[0].mxu0 %v66
    %v143 = vpop.f32.mrb[0].mxu0
    %v144 = vadd.f32 0.0, %v143
    %v145 = vpop.f32.mrb[0].mxu0
    %146 = vmatprep.mubr.f32.mxu0 0.0
    %147 = vmatmul.mubr.f32.gmra.mrb[0].mxu0 %v69
    %v148 = vpop.f32.mrb[0].mxu0
    %v149 = vadd.f32 0.0, %v148
    %v150 = vpop.f32.mrb[0].mxu0
    %151 = vmatprep.mubr.f32.mxu0 0.0
    %152 = vmatmul.mubr.f32.gmra.mrb[0].mxu0 %v72
    %v153 = vpop.f32.mrb[0].mxu0
    %v154 = vadd.f32 0.0, %v153
    %v155 = vpop.f32.mrb[0].mxu0
    %156 = vmatprep.mubr.f32.mxu0 0.0
    %157 = vmatmul.mubr.f32.gmra.mrb[0].mxu0 %v75
    %v158 = vpop.f32.mrb[0].mxu0
    %v159 = vadd.f32 0.0, %v158
    %v160 = vpop.f32.mrb[0].mxu0
    %161 = vdwg.mxu0
    %v162 = vld [vmem:[%s2] sm:$0xff]
    %v163 = vld [vmem:[%s2 + $0x8] sm:$0xff]
    %v164 = vld [vmem:[%s2 + $0x10] sm:$0xff]
    %v165 = vld [vmem:[%s2 + $0x18] sm:$0xff]
    %v166 = vrot.slane %v144, 1
    %v167 = vrot.slane %v149, 1
    %v168 = vrot.slane %v154, 1
    %v169 = vrot.slane %v159, 1
    %v170 = vlaneseq
    %v171 = vshrl.u32 %v170, 7
    %vm172 = vcmp.lt.s32.totalorder %v171, 7
    %v173 = vsel %vm172, %v168, %v169
    %v174 = vsel %vm172, %v167, %v168
    %v175 = vsel %vm172, %v166, %v167
    %v176 = vsel %vm172, %v169, %v166
    %v177 = vld [vmem:[%s2 + $0x20] sm:$0xff]
    %v178 = vld [vmem:[%s2 + $0x28] sm:$0xff]
    %v179 = vld [vmem:[%s2 + $0x30] sm:$0xff]
    %v180 = vld [vmem:[%s2 + $0x38] sm:$0xff]
    %vm181 = vcmask 261120
    %v183 = vsel %vm181, %v175, 0
    %v186 = vsel %vm181, %v174, 0
    %v189 = vsel %vm181, %v173, 0
    %v192 = vsel %vm181, %v176, 0
    %194 = vmatprep.subr.mxu0 0.0
    %195 = vmatpush1.msra.mxu0 %v177
    %196 = vmatprep.subr.mxu0 0.0
    %197 = vmatpush1.msra.mxu0 %v178
    %198 = vmatprep.subr.mxu0 0.0
    %199 = vmatpush1.msra.mxu0 %v179
    %200 = vmatprep.subr.mxu0 0.0
    %201 = vmatpush1.msra.mxu0 %v180
    %202 = vmatprep.subr.mxu0 0.0
    %203 = vmatpush1.msra.mxu0 0.0
    %204 = vmatprep.subr.mxu0 0.0
    %205 = vmatpush1.msra.mxu0 0.0
    %206 = vmatprep.subr.mxu0 0.0
    %207 = vmatpush1.msra.mxu0 0.0
    %208 = vmatprep.subr.mxu0 0.0
    %209 = vmatpush1.msra.mxu0 0.0
    %210 = vmatprep.subr.mxu0 0.0
    %211 = vmatpush1.msra.mxu0 0.0
    %212 = vmatprep.subr.mxu0 0.0
    %213 = vmatpush1.msra.mxu0 0.0
    %214 = vmatprep.subr.mxu0 0.0
    %215 = vmatpush1.msra.mxu0 0.0
    %216 = vmatprep.subr.mxu0 0.0
    %217 = vmatpush1.msra.mxu0 0.0
    %218 = vmatprep.subr.mxu0 0.0
    %219 = vmatpush1.msra.mxu0 0.0
    %220 = vmatprep.subr.mxu0 0.0
    %221 = vmatpush1.msra.mxu0 0.0
    %222 = vmatprep.subr.mxu0 0.0
    %223 = vmatpush1.msra.mxu0 0.0
    %224 = vmatprep.subr.mxu0 0.0
    %225 = vmatpush1.msra.mxu0 0.0
    %226 = vmatprep.subr.mxu0 0.0
    %227 = vmatpush1.msra.mxu0 0.0
    %228 = vmatprep.subr.mxu0 0.0
    %229 = vmatpush1.msra.mxu0 0.0
    %230 = vmatprep.subr.mxu0 0.0
    %231 = vmatpush1.msra.mxu0 0.0
    %232 = vmatprep.subr.mxu0 0.0
    %233 = vmatpush1.msra.mxu0 0.0
    %234 = vmatprep.subr.mxu0 0.0
    %235 = vmatpush1.msra.mxu0 0.0
    %236 = vmatprep.subr.mxu0 0.0
    %237 = vmatpush1.msra.mxu0 0.0
    %238 = vmatprep.subr.mxu0 0.0
    %239 = vmatpush1.msra.mxu0 0.0
    %240 = vmatprep.subr.mxu0 0.0
    %241 = vmatpush1.msra.mxu0 0.0
    %242 = vmatprep.subr.mxu0 0.0
    %243 = vmatpush1.msra.mxu0 0.0
    %244 = vmatprep.subr.mxu0 0.0
    %245 = vmatpush1.msra.mxu0 0.0
    %246 = vmatprep.subr.mxu0 0.0
    %247 = vmatpush1.msra.mxu0 0.0
    %248 = vmatprep.subr.mxu0 0.0
    %249 = vmatpush1.msra.mxu0 0.0
    %250 = vmatprep.subr.mxu0 0.0
    %251 = vmatpush1.msra.mxu0 0.0
    %252 = vmatprep.subr.mxu0 0.0
    %253 = vmatpush1.msra.mxu0 0.0
    %254 = vmatprep.subr.mxu0 0.0
    %255 = vmatpush1.msra.mxu0 0.0
    %256 = vmatprep.subr.mxu0 0.0
    %257 = vmatpush1.msra.mxu0 0.0
    %258 = vmatprep.mubr.f32.mxu0 0.0
    %259 = vmatmul.mubr.f32.gmra.mrb[0].mxu0 %v183
    %v260 = vpop.f32.mrb[0].mxu0
    %v261 = vadd.f32 0.0, %v260
    %v262 = vpop.f32.mrb[0].mxu0
    %263 = vmatprep.mubr.f32.mxu0 0.0
    %264 = vmatmul.mubr.f32.gmra.mrb[0].mxu0 %v186
    %v265 = vpop.f32.mrb[0].mxu0
    %v266 = vadd.f32 0.0, %v265
    %v267 = vpop.f32.mrb[0].mxu0
    %268 = vmatprep.mubr.f32.mxu0 0.0
    %269 = vmatmul.mubr.f32.gmra.mrb[0].mxu0 %v189
    %v270 = vpop.f32.mrb[0].mxu0
    %v271 = vadd.f32 0.0, %v270
    %v272 = vpop.f32.mrb[0].mxu0
    %273 = vmatprep.mubr.f32.mxu0 0.0
    %274 = vmatmul.mubr.f32.gmra.mrb[0].mxu0 %v192
    %v275 = vpop.f32.mrb[0].mxu0
    %v276 = vadd.f32 0.0, %v275
    %v277 = vpop.f32.mrb[0].mxu0
    %278 = vdwg.mxu0
    %v280 = vsel %vm181, %v144, 0
    %v283 = vsel %vm181, %v149, 0
    %v286 = vsel %vm181, %v154, 0
    %v289 = vsel %vm181, %v159, 0
    %291 = vmatprep.subr.mxu0 0.0
    %292 = vmatpush1.msra.mxu0 %v162
    %293 = vmatprep.subr.mxu0 0.0
    %294 = vmatpush1.msra.mxu0 %v163
    %295 = vmatprep.subr.mxu0 0.0
    %296 = vmatpush1.msra.mxu0 %v164
    %297 = vmatprep.subr.mxu0 0.0
    %298 = vmatpush1.msra.mxu0 %v165
    %299 = vmatprep.subr.mxu0 0.0
    %300 = vmatpush1.msra.mxu0 0.0
    %301 = vmatprep.subr.mxu0 0.0
    %302 = vmatpush1.msra.mxu0 0.0
    %303 = vmatprep.subr.mxu0 0.0
    %304 = vmatpush1.msra.mxu0 0.0
    %305 = vmatprep.subr.mxu0 0.0
    %306 = vmatpush1.msra.mxu0 0.0
    %307 = vmatprep.subr.mxu0 0.0
    %308 = vmatpush1.msra.mxu0 0.0
    %309 = vmatprep.subr.mxu0 0.0
    %310 = vmatpush1.msra.mxu0 0.0
    %311 = vmatprep.subr.mxu0 0.0
    %312 = vmatpush1.msra.mxu0 0.0
    %313 = vmatprep.subr.mxu0 0.0
    %314 = vmatpush1.msra.mxu0 0.0
    %315 = vmatprep.subr.mxu0 0.0
    %316 = vmatpush1.msra.mxu0 0.0
    %317 = vmatprep.subr.mxu0 0.0
    %318 = vmatpush1.msra.mxu0 0.0
    %319 = vmatprep.subr.mxu0 0.0
    %320 = vmatpush1.msra.mxu0 0.0
    %321 = vmatprep.subr.mxu0 0.0
    %322 = vmatpush1.msra.mxu0 0.0
    %323 = vmatprep.subr.mxu0 0.0
    %324 = vmatpush1.msra.mxu0 0.0
    %325 = vmatprep.subr.mxu0 0.0
    %326 = vmatpush1.msra.mxu0 0.0
    %327 = vmatprep.subr.mxu0 0.0
    %328 = vmatpush1.msra.mxu0 0.0
    %329 = vmatprep.subr.mxu0 0.0
    %330 = vmatpush1.msra.mxu0 0.0
    %331 = vmatprep.subr.mxu0 0.0
    %332 = vmatpush1.msra.mxu0 0.0
    %333 = vmatprep.subr.mxu0 0.0
    %334 = vmatpush1.msra.mxu0 0.0
    %335 = vmatprep.subr.mxu0 0.0
    %336 = vmatpush1.msra.mxu0 0.0
    %337 = vmatprep.subr.mxu0 0.0
    %338 = vmatpush1.msra.mxu0 0.0
    %339 = vmatprep.subr.mxu0 0.0
    %340 = vmatpush1.msra.mxu0 0.0
    %341 = vmatprep.subr.mxu0 0.0
    %342 = vmatpush1.msra.mxu0 0.0
    %343 = vmatprep.subr.mxu0 0.0
    %344 = vmatpush1.msra.mxu0 0.0
    %345 = vmatprep.subr.mxu0 0.0
    %346 = vmatpush1.msra.mxu0 0.0
    %347 = vmatprep.subr.mxu0 0.0
    %348 = vmatpush1.msra.mxu0 0.0
    %349 = vmatprep.subr.mxu0 0.0
    %350 = vmatpush1.msra.mxu0 0.0
    %351 = vmatprep.subr.mxu0 0.0
    %352 = vmatpush1.msra.mxu0 0.0
    %353 = vmatprep.subr.mxu0 0.0
    %354 = vmatpush1.msra.mxu0 0.0
    %355 = vmatprep.mubr.f32.mxu0 0.0
    %356 = vmatmul.mubr.f32.gmra.mrb[0].mxu0 %v280
    %v357 = vpop.f32.mrb[0].mxu0
    %v358 = vadd.f32 %v261, %v357
    %v359 = vpop.f32.mrb[0].mxu0
    %360 = vmatprep.mubr.f32.mxu0 0.0
    %361 = vmatmul.mubr.f32.gmra.mrb[0].mxu0 %v283
    %v362 = vpop.f32.mrb[0].mxu0
    %v363 = vadd.f32 %v266, %v362
    %v364 = vpop.f32.mrb[0].mxu0
    %365 = vmatprep.mubr.f32.mxu0 0.0
    %366 = vmatmul.mubr.f32.gmra.mrb[0].mxu0 %v286
    %v367 = vpop.f32.mrb[0].mxu0
    %v368 = vadd.f32 %v271, %v367
    %v369 = vpop.f32.mrb[0].mxu0
    %370 = vmatprep.mubr.f32.mxu0 0.0
    %371 = vmatmul.mubr.f32.gmra.mrb[0].mxu0 %v289
    %v372 = vpop.f32.mrb[0].mxu0
    %v373 = vadd.f32 %v276, %v372
    %v374 = vpop.f32.mrb[0].mxu0
    %375 = vdwg.mxu0
    %v376 = vrot.slane %v144, 2
    %v377 = vrot.slane %v149, 2
    %v378 = vrot.slane %v154, 2
    %v379 = vrot.slane %v159, 2
    %vm380 = vcmp.lt.s32.totalorder %v171, 6
    %v381 = vsel %vm380, %v378, %v379
    %v382 = vsel %vm380, %v377, %v378
    %v383 = vsel %vm380, %v376, %v377
    %v384 = vsel %vm380, %v379, %v376
    %v385 = vld [vmem:[%s2 + $0x40] sm:$0xff]
    %v386 = vld [vmem:[%s2 + $0x48] sm:$0xff]
    %v387 = vld [vmem:[%s2 + $0x50] sm:$0xff]
    %v388 = vld [vmem:[%s2 + $0x58] sm:$0xff]
    %v390 = vsel %vm181, %v383, 0
    %v393 = vsel %vm181, %v382, 0
    %v396 = vsel %vm181, %v381, 0
    %v399 = vsel %vm181, %v384, 0
    %401 = vmatprep.subr.mxu0 0.0
    %402 = vmatpush1.msra.mxu0 %v385
    %403 = vmatprep.subr.mxu0 0.0
    %404 = vmatpush1.msra.mxu0 %v386
    %405 = vmatprep.subr.mxu0 0.0
    %406 = vmatpush1.msra.mxu0 %v387
    %407 = vmatprep.subr.mxu0 0.0
    %408 = vmatpush1.msra.mxu0 %v388
    %409 = vmatprep.subr.mxu0 0.0
    %410 = vmatpush1.msra.mxu0 0.0
    %411 = vmatprep.subr.mxu0 0.0
    %412 = vmatpush1.msra.mxu0 0.0
    %413 = vmatprep.subr.mxu0 0.0
    %414 = vmatpush1.msra.mxu0 0.0
    %415 = vmatprep.subr.mxu0 0.0
    %416 = vmatpush1.msra.mxu0 0.0
    %417 = vmatprep.subr.mxu0 0.0
    %418 = vmatpush1.msra.mxu0 0.0
    %419 = vmatprep.subr.mxu0 0.0
    %420 = vmatpush1.msra.mxu0 0.0
    %421 = vmatprep.subr.mxu0 0.0
    %422 = vmatpush1.msra.mxu0 0.0
    %423 = vmatprep.subr.mxu0 0.0
    %424 = vmatpush1.msra.mxu0 0.0
    %425 = vmatprep.subr.mxu0 0.0
    %426 = vmatpush1.msra.mxu0 0.0
    %427 = vmatprep.subr.mxu0 0.0
    %428 = vmatpush1.msra.mxu0 0.0
    %429 = vmatprep.subr.mxu0 0.0
    %430 = vmatpush1.msra.mxu0 0.0
    %431 = vmatprep.subr.mxu0 0.0
    %432 = vmatpush1.msra.mxu0 0.0
    %433 = vmatprep.subr.mxu0 0.0
    %434 = vmatpush1.msra.mxu0 0.0
    %435 = vmatprep.subr.mxu0 0.0
    %436 = vmatpush1.msra.mxu0 0.0
    %437 = vmatprep.subr.mxu0 0.0
    %438 = vmatpush1.msra.mxu0 0.0
    %439 = vmatprep.subr.mxu0 0.0
    %440 = vmatpush1.msra.mxu0 0.0
    %441 = vmatprep.subr.mxu0 0.0
    %442 = vmatpush1.msra.mxu0 0.0
    %443 = vmatprep.subr.mxu0 0.0
    %444 = vmatpush1.msra.mxu0 0.0
    %445 = vmatprep.subr.mxu0 0.0
    %446 = vmatpush1.msra.mxu0 0.0
    %447 = vmatprep.subr.mxu0 0.0
    %448 = vmatpush1.msra.mxu0 0.0
    %449 = vmatprep.subr.mxu0 0.0
    %450 = vmatpush1.msra.mxu0 0.0
    %451 = vmatprep.subr.mxu0 0.0
    %452 = vmatpush1.msra.mxu0 0.0
    %453 = vmatprep.subr.mxu0 0.0
    %454 = vmatpush1.msra.mxu0 0.0
    %455 = vmatprep.subr.mxu0 0.0
    %456 = vmatpush1.msra.mxu0 0.0
    %457 = vmatprep.subr.mxu0 0.0
    %458 = vmatpush1.msra.mxu0 0.0
    %459 = vmatprep.subr.mxu0 0.0
    %460 = vmatpush1.msra.mxu0 0.0
    %461 = vmatprep.subr.mxu0 0.0
    %462 = vmatpush1.msra.mxu0 0.0
    %463 = vmatprep.subr.mxu0 0.0
    %464 = vmatpush1.msra.mxu0 0.0
    %465 = vmatprep.mubr.f32.mxu0 0.0
    %466 = vmatmul.mubr.f32.gmra.mrb[0].mxu0 %v390
    %v467 = vpop.f32.mrb[0].mxu0
    %v468 = vadd.f32 0.0, %v467
    %v469 = vpop.f32.mrb[0].mxu0
    %470 = vmatprep.mubr.f32.mxu0 0.0
    %471 = vmatmul.mubr.f32.gmra.mrb[0].mxu0 %v393
    %v472 = vpop.f32.mrb[0].mxu0
    %v473 = vadd.f32 0.0, %v472
    %v474 = vpop.f32.mrb[0].mxu0
    %475 = vmatprep.mubr.f32.mxu0 0.0
    %476 = vmatmul.mubr.f32.gmra.mrb[0].mxu0 %v396
    %v477 = vpop.f32.mrb[0].mxu0
    %v478 = vadd.f32 0.0, %v477
    %v479 = vpop.f32.mrb[0].mxu0
    %480 = vmatprep.mubr.f32.mxu0 0.0
    %481 = vmatmul.mubr.f32.gmra.mrb[0].mxu0 %v399
    %v482 = vpop.f32.mrb[0].mxu0
    %v483 = vadd.f32 0.0, %v482
    %v484 = vpop.f32.mrb[0].mxu0
    %485 = vdwg.mxu0
    %v486 = vadd.f32 %v358, %v468
    %v487 = vadd.f32 %v363, %v473
    %v488 = vadd.f32 %v368, %v478
    %v489 = vadd.f32 %v373, %v483
    %v490 = vrot.slane %v144, 3
    %v491 = vrot.slane %v149, 3
    %v492 = vrot.slane %v154, 3
    %v493 = vrot.slane %v159, 3
    %vm494 = vcmp.lt.s32.totalorder %v171, 5
    %v495 = vsel %vm494, %v492, %v493
    %v496 = vsel %vm494, %v491, %v492
    %v497 = vsel %vm494, %v490, %v491
    %v498 = vsel %vm494, %v493, %v490
    %v499 = vld [vmem:[%s2 + $0x60] sm:$0xff]
    %v500 = vld [vmem:[%s2 + $0x68] sm:$0xff]
    %v501 = vld [vmem:[%s2 + $0x70] sm:$0xff]
    %v502 = vld [vmem:[%s2 + $0x78] sm:$0xff]
    %v504 = vsel %vm181, %v497, 0
    %v507 = vsel %vm181, %v496, 0
    %v510 = vsel %vm181, %v495, 0
    %v513 = vsel %vm181, %v498, 0
    %515 = vmatprep.subr.mxu0 0.0
    %516 = vmatpush1.msra.mxu0 %v499
    %517 = vmatprep.subr.mxu0 0.0
    %518 = vmatpush1.msra.mxu0 %v500
    %519 = vmatprep.subr.mxu0 0.0
    %520 = vmatpush1.msra.mxu0 %v501
    %521 = vmatprep.subr.mxu0 0.0
    %522 = vmatpush1.msra.mxu0 %v502
    %523 = vmatprep.subr.mxu0 0.0
    %524 = vmatpush1.msra.mxu0 0.0
    %525 = vmatprep.subr.mxu0 0.0
    %526 = vmatpush1.msra.mxu0 0.0
    %527 = vmatprep.subr.mxu0 0.0
    %528 = vmatpush1.msra.mxu0 0.0
    %529 = vmatprep.subr.mxu0 0.0
    %530 = vmatpush1.msra.mxu0 0.0
    %531 = vmatprep.subr.mxu0 0.0
    %532 = vmatpush1.msra.mxu0 0.0
    %533 = vmatprep.subr.mxu0 0.0
    %534 = vmatpush1.msra.mxu0 0.0
    %535 = vmatprep.subr.mxu0 0.0
    %536 = vmatpush1.msra.mxu0 0.0
    %537 = vmatprep.subr.mxu0 0.0
    %538 = vmatpush1.msra.mxu0 0.0
    %539 = vmatprep.subr.mxu0 0.0
    %540 = vmatpush1.msra.mxu0 0.0
    %541 = vmatprep.subr.mxu0 0.0
    %542 = vmatpush1.msra.mxu0 0.0
    %543 = vmatprep.subr.mxu0 0.0
    %544 = vmatpush1.msra.mxu0 0.0
    %545 = vmatprep.subr.mxu0 0.0
    %546 = vmatpush1.msra.mxu0 0.0
    %547 = vmatprep.subr.mxu0 0.0
    %548 = vmatpush1.msra.mxu0 0.0
    %549 = vmatprep.subr.mxu0 0.0
    %550 = vmatpush1.msra.mxu0 0.0
    %551 = vmatprep.subr.mxu0 0.0
    %552 = vmatpush1.msra.mxu0 0.0
    %553 = vmatprep.subr.mxu0 0.0
    %554 = vmatpush1.msra.mxu0 0.0
    %555 = vmatprep.subr.mxu0 0.0
    %556 = vmatpush1.msra.mxu0 0.0
    %557 = vmatprep.subr.mxu0 0.0
    %558 = vmatpush1.msra.mxu0 0.0
    %559 = vmatprep.subr.mxu0 0.0
    %560 = vmatpush1.msra.mxu0 0.0
    %561 = vmatprep.subr.mxu0 0.0
    %562 = vmatpush1.msra.mxu0 0.0
    %563 = vmatprep.subr.mxu0 0.0
    %564 = vmatpush1.msra.mxu0 0.0
    %565 = vmatprep.subr.mxu0 0.0
    %566 = vmatpush1.msra.mxu0 0.0
    %567 = vmatprep.subr.mxu0 0.0
    %568 = vmatpush1.msra.mxu0 0.0
    %569 = vmatprep.subr.mxu0 0.0
    %570 = vmatpush1.msra.mxu0 0.0
    %571 = vmatprep.subr.mxu0 0.0
    %572 = vmatpush1.msra.mxu0 0.0
    %573 = vmatprep.subr.mxu0 0.0
    %574 = vmatpush1.msra.mxu0 0.0
    %575 = vmatprep.subr.mxu0 0.0
    %576 = vmatpush1.msra.mxu0 0.0
    %577 = vmatprep.subr.mxu0 0.0
    %578 = vmatpush1.msra.mxu0 0.0
    %579 = vmatprep.mubr.f32.mxu0 0.0
    %580 = vmatmul.mubr.f32.gmra.mrb[0].mxu0 %v504
    %v581 = vpop.f32.mrb[0].mxu0
    %v582 = vadd.f32 0.0, %v581
    %v583 = vpop.f32.mrb[0].mxu0
    %584 = vmatprep.mubr.f32.mxu0 0.0
    %585 = vmatmul.mubr.f32.gmra.mrb[0].mxu0 %v507
    %v586 = vpop.f32.mrb[0].mxu0
    %v587 = vadd.f32 0.0, %v586
    %v588 = vpop.f32.mrb[0].mxu0
    %589 = vmatprep.mubr.f32.mxu0 0.0
    %590 = vmatmul.mubr.f32.gmra.mrb[0].mxu0 %v510
    %v591 = vpop.f32.mrb[0].mxu0
    %v592 = vadd.f32 0.0, %v591
    %v593 = vpop.f32.mrb[0].mxu0
    %594 = vmatprep.mubr.f32.mxu0 0.0
    %595 = vmatmul.mubr.f32.gmra.mrb[0].mxu0 %v513
    %v596 = vpop.f32.mrb[0].mxu0
    %v597 = vadd.f32 0.0, %v596
    %v598 = vpop.f32.mrb[0].mxu0
    %599 = vdwg.mxu0
    %v600 = vadd.f32 %v486, %v582
    %v601 = vadd.f32 %v487, %v587
    %v602 = vadd.f32 %v488, %v592
    %v603 = vadd.f32 %v489, %v597
    %v604 = vld [vmem:[%s3] sm:$0x1]
    %v606 = vlaneseq
    %v607 = vshrl.u32 %v606, 7
    %v608 = vsub.s32 0, %v607
    %v609 = vrot.slane %v604, %v608
    %v611 = vadd.f32 %v600, %v609
    %v612 = vadd.f32 %v601, %v609
    %v613 = vadd.f32 %v602, %v609
    %v614 = vadd.f32 %v603, %v609
    %v615 = vmax.f32 %v611, 0.0
    %v616 = vmax.f32 %v612, 0.0
    %v617 = vmax.f32 %v613, 0.0
    %v618 = vmax.f32 %v614, 0.0
    %v619 = vld [vmem:[%s4] sm:$0xff]
    %v620 = vld [vmem:[%s4 + $0x8] sm:$0xff]
    %v621 = vld [vmem:[%s4 + $0x10] sm:$0xff]
    %v622 = vld [vmem:[%s4 + $0x18] sm:$0xff]
    %v623 = vmul.f32 %v615, %v619
    %v624 = vmul.f32 %v616, %v620
    %v625 = vmul.f32 %v617, %v621
    %v626 = vmul.f32 %v618, %v622
    %vm627 = vcmask 195584
    %v628 = vsel %vm627, %v623, -inf
    %v629 = vsel %vm627, %v624, -inf
    %v630 = vmax.f32 %v628, %v629
    %v631 = vrot.slane %v630, 4
    %v632 = vmax.f32 %v630, %v631
    %v633 = vrot.slane %v632, 2
    %v634 = vmax.f32 %v632, %v633
    %v635 = vrot.slane %v634, 1
    %v636 = vmax.f32 %v634, %v635
    %v637 = vsel %vm627, %v625, -inf
    %v638 = vsel %vm627, %v626, -inf
    %v639 = vmax.f32 %v637, %v638
    %v640 = vrot.slane %v639, 4
    %v641 = vmax.f32 %v639, %v640
    %v642 = vrot.slane %v641, 2
    %v643 = vmax.f32 %v641, %v642
    %v644 = vrot.slane %v643, 1
    %v645 = vmax.f32 %v643, %v644
    %v646 = vld [vmem:[%s5] sm:$0xff]
    %v647 = vld [vmem:[%s5 + $0x8] sm:$0xff]
    %v648 = vld [vmem:[%s5 + $0x10] sm:$0xff]
    %v649 = vld [vmem:[%s6] sm:$0x1]
    %v651 = vlaneseq
    %v652 = vshrl.u32 %v651, 7
    %v653 = vsub.s32 0, %v652
    %v654 = vrot.slane %v649, %v653
    %vm658 = vcmask 1041409
    %v659 = vsel %vm658, %v645, %v636
    %v660 = vsel %vm627, %v659, 0
    %662 = vmatprep.subr.mxu0 0.0
    %663 = vmatpush1.msra.mxu0 %v646
    %664 = vmatprep.subr.mxu0 0.0
    %665 = vmatpush1.msra.mxu0 %v647
    %666 = vmatprep.subr.mxu0 0.0
    %667 = vmatpush1.msra.mxu0 %v648
    %668 = vmatprep.subr.mxu0 0.0
    %669 = vmatpush1.msra.mxu0 0.0
    %670 = vmatprep.subr.mxu0 0.0
    %671 = vmatpush1.msra.mxu0 0.0
    %672 = vmatprep.subr.mxu0 0.0
    %673 = vmatpush1.msra.mxu0 0.0
    %674 = vmatprep.subr.mxu0 0.0
    %675 = vmatpush1.msra.mxu0 0.0
    %676 = vmatprep.subr.mxu0 0.0
    %677 = vmatpush1.msra.mxu0 0.0
    %678 = vmatprep.subr.mxu0 0.0
    %679 = vmatpush1.msra.mxu0 0.0
    %680 = vmatprep.subr.mxu0 0.0
    %681 = vmatpush1.msra.mxu0 0.0
    %682 = vmatprep.subr.mxu0 0.0
    %683 = vmatpush1.msra.mxu0 0.0
    %684 = vmatprep.subr.mxu0 0.0
    %685 = vmatpush1.msra.mxu0 0.0
    %686 = vmatprep.subr.mxu0 0.0
    %687 = vmatpush1.msra.mxu0 0.0
    %688 = vmatprep.subr.mxu0 0.0
    %689 = vmatpush1.msra.mxu0 0.0
    %690 = vmatprep.subr.mxu0 0.0
    %691 = vmatpush1.msra.mxu0 0.0
    %692 = vmatprep.subr.mxu0 0.0
    %693 = vmatpush1.msra.mxu0 0.0
    %694 = vmatprep.subr.mxu0 0.0
    %695 = vmatpush1.msra.mxu0 0.0
    %696 = vmatprep.subr.mxu0 0.0
    %697 = vmatpush1.msra.mxu0 0.0
    %698 = vmatprep.subr.mxu0 0.0
    %699 = vmatpush1.msra.mxu0 0.0
    %700 = vmatprep.subr.mxu0 0.0
    %701 = vmatpush1.msra.mxu0 0.0
    %702 = vmatprep.subr.mxu0 0.0
    %703 = vmatpush1.msra.mxu0 0.0
    %704 = vmatprep.subr.mxu0 0.0
    %705 = vmatpush1.msra.mxu0 0.0
    %706 = vmatprep.subr.mxu0 0.0
    %707 = vmatpush1.msra.mxu0 0.0
    %708 = vmatprep.subr.mxu0 0.0
    %709 = vmatpush1.msra.mxu0 0.0
    %710 = vmatprep.subr.mxu0 0.0
    %711 = vmatpush1.msra.mxu0 0.0
    %712 = vmatprep.subr.mxu0 0.0
    %713 = vmatpush1.msra.mxu0 0.0
    %714 = vmatprep.subr.mxu0 0.0
    %715 = vmatpush1.msra.mxu0 0.0
    %716 = vmatprep.subr.mxu0 0.0
    %717 = vmatpush1.msra.mxu0 0.0
    %718 = vmatprep.subr.mxu0 0.0
    %719 = vmatpush1.msra.mxu0 0.0
    %720 = vmatprep.subr.mxu0 0.0
    %721 = vmatpush1.msra.mxu0 0.0
    %722 = vmatprep.subr.mxu0 0.0
    %723 = vmatpush1.msra.mxu0 0.0
    %724 = vmatprep.subr.mxu0 0.0
    %725 = vmatpush1.msra.mxu0 0.0
    %726 = vmatprep.mubr.f32.mxu0 0.0
    %727 = vmatmul.mubr.f32.gmra.mrb[0].mxu0 %v660
    %v728 = vpop.f32.mrb[0].mxu0
    %v729 = vadd.f32 %v654, %v728
    %v730 = vpop.f32.mrb[0].mxu0
    %731 = vdwg.mxu0
    %vm732 = vcmask 33792
    %733 = vst.msk [vmem:[#allocation2] sm:$0x3] %vm732, %v729
    // Predicated region
    $region30: #{textcnn_forward.1} parent=1 // pred_check
      _
    $region31: #{textcnn_forward.1} parent=1 // pred_check_branch
      %735 = sbr.rel (0) target = $region33
    $region32: #{textcnn_forward.1} parent=1 // pred_region
      %s737 = ssub.s32 32, 32
      %738 = vsyncadd [#allocation3], %s737
      %s740 = sshll.u32 [#allocation2], 4
      %s741 = int_to_ptr.vmem [resolvable:$true] %s740
      %743 = dma.vmem_to_hbm [thread:$0]  %s741, 32, %s7, [#allocation3]
    $region33: #{textcnn_forward.1} parent=1 // pred_fallthru
      _
    // Predicated region
    $region34: #{textcnn_forward.1} parent=1 // pred_check
      _
    $region35: #{textcnn_forward.1} parent=1 // pred_check_branch
      %745 = sbr.rel (0) target = $region37
    $region36: #{textcnn_forward.1} parent=1 // pred_region
      %746 = dma.done [#allocation3], 32
    $region37: #{textcnn_forward.1} parent=1 // pred_fallthru
      _
    %747 = vsyncpa [#allocation3], 1

</llo_original>
